<compile_context>
chip_gen: v7x
topology: tpu7x:2x2x1
jax: 0.10.0
libtpu: 0.0.40
codegen_flags: <defaults>
</compile_context>

<pallas_src>
import jax
import jax.numpy as jnp
from jax.experimental import pallas as pl
from jax.experimental.pallas import tpu as pltpu

LANES = 128


def net_kernel(p_ref, x_ref, o_ref):
    # p_ref: (16,) f32 in SMEM = [w1[0..4], b1[0..4], w2[0..4], b2]
    # x_ref/o_ref: (block_rows, 128) f32 in VMEM, batch on the lane axis.
    x = x_ref[...]
    acc = jnp.full(x.shape, p_ref[15], dtype=jnp.float32)      # + b2
    for j in range(5):                                          # unrolled FMA chain
        h = jnp.maximum(x * p_ref[j] + p_ref[5 + j], 0.0)       # relu(fc1)
        acc = acc + h * p_ref[10 + j]                           # fc2 accumulate
    o_ref[...] = acc.astype(o_ref.dtype)


def net_forward(x, w1, b1, w2, b2):
    """x: (N, 1) f32; weights in (in, out) layout (transposed vs. torch)."""
    n = x.shape[0]

    # Pack the 16 parameter scalars into one SMEM-resident vector.
    params = jnp.concatenate(
        [w1.reshape(-1), b1.reshape(-1), w2.reshape(-1), b2.reshape(-1)]
    ).astype(jnp.float32)  # (16,)

    # Lane-dense batch layout: N -> (rows, 128), padded to whole tiles.
    total_rows = pl.cdiv(n, LANES)
    block_rows = 8 if total_rows <= 8 else min(512, pl.cdiv(total_rows, 8) * 8)
    padded_rows = pl.cdiv(total_rows, block_rows) * block_rows
    num_tiles = padded_rows // block_rows

    x_flat = x.reshape(-1).astype(jnp.float32)
    x_flat = jnp.pad(x_flat, (0, padded_rows * LANES - n))
    x2d = x_flat.reshape(padded_rows, LANES)

    out2d = pl.pallas_call(
        net_kernel,
        out_shape=jax.ShapeDtypeStruct((padded_rows, LANES), jnp.float32),
        grid=(num_tiles,),
        in_specs=[
            pl.BlockSpec(memory_space=pltpu.MemorySpace.SMEM),      # params (whole, SMEM)
            pl.BlockSpec((block_rows, LANES), lambda i: (i, 0)),    # x tiles (VMEM)
        ],
        out_specs=pl.BlockSpec((block_rows, LANES), lambda i: (i, 0)),
        compiler_params=pltpu.CompilerParams(
            dimension_semantics=("parallel",),
            vmem_limit_bytes=32 * 1024 * 1024,
        ),
    )(params, x2d)

    # Back to (N, 1), dropping the pad tail.
    return out2d.reshape(-1)[:n].reshape(n, 1)


def init_params(key):
    # Deterministic init mimicking torch.nn.Linear's U(-1/sqrt(fan_in), 1/sqrt(fan_in)).
    k1, k2, k3, k4 = jax.random.split(key, 4)
    bound1 = 1.0 / (1.0 ** 0.5)   # fan_in = 1
    bound2 = 1.0 / (5.0 ** 0.5)   # fan_in = 5
    w1 = jax.random.uniform(k1, (1, 5), jnp.float32, -bound1, bound1)  # (in, out)
    b1 = jax.random.uniform(k2, (1, 5), jnp.float32, -bound1, bound1)
    w2 = jax.random.uniform(k3, (5, 1), jnp.float32, -bound2, bound2)
    b2 = jax.random.uniform(k4, (1, 1), jnp.float32, -bound2, bound2)
    return w1, b1, w2, b2


if __name__ == "__main__":
    key = jax.random.PRNGKey(0)
    w1, b1, w2, b2 = init_params(key)

    # Same input data as the original script: (20, 1) column of 5s and 10s.
    x = jnp.array(
        [[5.0], [10.0], [10.0], [5.0], [10.0], [5.0], [10.0], [10.0], [5.0],
         [10.0], [5.0], [10.0], [10.0], [5.0], [10.0], [5.0], [10.0], [10.0],
         [5.0], [10.0]],
        dtype=jnp.float32,
    )

    out = net_forward(x, w1, b1, w2, b2)
    jax.block_until_ready(out)

    # Reference check in plain JAX (same math as the torch forward).
    ref = jnp.maximum(x @ w1 + b1, 0.0) @ w2 + b2
    assert out.shape == (20, 1)
    assert jnp.allclose(out, ref, atol=1e-5), "mismatch vs reference"

    print("KERNEL_OK")
</pallas_src>

<mosaic_0001>
module attributes {stable_mosaic.version = 11 : i64} {
  func.func @net_kernel(%arg0: i32, %arg1: memref<16xf32, #tpu.memory_space<smem>>, %arg2: memref<8x128xf32, #tpu.memory_space<vmem>>, %arg3: memref<8x128xf32, #tpu.memory_space<vmem>>) attributes {dimension_semantics = [#tpu.dimension_semantics<parallel>], iteration_bounds = array<i64: 1>, scalar_prefetch = 0 : i64, scratch_operands = 0 : i64, tpu.core_type = #tpu.core_type<tc>, window_params = [{transform_indices = @transform_0, window_bounds = array<i64: 16>}, {transform_indices = @transform_1, window_bounds = array<i64: 8, 128>}, {transform_indices = @transform_2, window_bounds = array<i64: 8, 128>}]} {
    %c0 = arith.constant 0 : index
    %c0_0 = arith.constant 0 : index
    %0 = vector.load %arg2[%c0, %c0_0] : memref<8x128xf32, #tpu.memory_space<vmem>>, vector<8x128xf32>
    %c15 = arith.constant 15 : index
    %1 = memref.load %arg1[%c15] : memref<16xf32, #tpu.memory_space<smem>>
    %2 = vector.broadcast %1 : f32 to vector<8x128xf32>
    %c0_1 = arith.constant 0 : index
    %3 = memref.load %arg1[%c0_1] : memref<16xf32, #tpu.memory_space<smem>>
    %4 = vector.broadcast %3 : f32 to vector<8x128xf32>
    %5 = arith.mulf %0, %4 : vector<8x128xf32>
    %c5 = arith.constant 5 : index
    %6 = memref.load %arg1[%c5] : memref<16xf32, #tpu.memory_space<smem>>
    %7 = vector.broadcast %6 : f32 to vector<8x128xf32>
    %8 = arith.addf %5, %7 : vector<8x128xf32>
    %cst = arith.constant 0.000000e+00 : f32
    %9 = vector.broadcast %cst : f32 to vector<8x128xf32>
    %10 = arith.maximumf %8, %9 : vector<8x128xf32>
    %c10 = arith.constant 10 : index
    %11 = memref.load %arg1[%c10] : memref<16xf32, #tpu.memory_space<smem>>
    %12 = vector.broadcast %11 : f32 to vector<8x128xf32>
    %13 = arith.mulf %10, %12 : vector<8x128xf32>
    %14 = arith.addf %2, %13 : vector<8x128xf32>
    %c1 = arith.constant 1 : index
    %15 = memref.load %arg1[%c1] : memref<16xf32, #tpu.memory_space<smem>>
    %16 = vector.broadcast %15 : f32 to vector<8x128xf32>
    %17 = arith.mulf %0, %16 : vector<8x128xf32>
    %c6 = arith.constant 6 : index
    %18 = memref.load %arg1[%c6] : memref<16xf32, #tpu.memory_space<smem>>
    %19 = vector.broadcast %18 : f32 to vector<8x128xf32>
    %20 = arith.addf %17, %19 : vector<8x128xf32>
    %cst_2 = arith.constant 0.000000e+00 : f32
    %21 = vector.broadcast %cst_2 : f32 to vector<8x128xf32>
    %22 = arith.maximumf %20, %21 : vector<8x128xf32>
    %c11 = arith.constant 11 : index
    %23 = memref.load %arg1[%c11] : memref<16xf32, #tpu.memory_space<smem>>
    %24 = vector.broadcast %23 : f32 to vector<8x128xf32>
    %25 = arith.mulf %22, %24 : vector<8x128xf32>
    %26 = arith.addf %14, %25 : vector<8x128xf32>
    %c2 = arith.constant 2 : index
    %27 = memref.load %arg1[%c2] : memref<16xf32, #tpu.memory_space<smem>>
    %28 = vector.broadcast %27 : f32 to vector<8x128xf32>
    %29 = arith.mulf %0, %28 : vector<8x128xf32>
    %c7 = arith.constant 7 : index
    %30 = memref.load %arg1[%c7] : memref<16xf32, #tpu.memory_space<smem>>
    %31 = vector.broadcast %30 : f32 to vector<8x128xf32>
    %32 = arith.addf %29, %31 : vector<8x128xf32>
    %cst_3 = arith.constant 0.000000e+00 : f32
    %33 = vector.broadcast %cst_3 : f32 to vector<8x128xf32>
    %34 = arith.maximumf %32, %33 : vector<8x128xf32>
    %c12 = arith.constant 12 : index
    %35 = memref.load %arg1[%c12] : memref<16xf32, #tpu.memory_space<smem>>
    %36 = vector.broadcast %35 : f32 to vector<8x128xf32>
    %37 = arith.mulf %34, %36 : vector<8x128xf32>
    %38 = arith.addf %26, %37 : vector<8x128xf32>
    %c3 = arith.constant 3 : index
    %39 = memref.load %arg1[%c3] : memref<16xf32, #tpu.memory_space<smem>>
    %40 = vector.broadcast %39 : f32 to vector<8x128xf32>
    %41 = arith.mulf %0, %40 : vector<8x128xf32>
    %c8 = arith.constant 8 : index
    %42 = memref.load %arg1[%c8] : memref<16xf32, #tpu.memory_space<smem>>
    %43 = vector.broadcast %42 : f32 to vector<8x128xf32>
    %44 = arith.addf %41, %43 : vector<8x128xf32>
    %cst_4 = arith.constant 0.000000e+00 : f32
    %45 = vector.broadcast %cst_4 : f32 to vector<8x128xf32>
    %46 = arith.maximumf %44, %45 : vector<8x128xf32>
    %c13 = arith.constant 13 : index
    %47 = memref.load %arg1[%c13] : memref<16xf32, #tpu.memory_space<smem>>
    %48 = vector.broadcast %47 : f32 to vector<8x128xf32>
    %49 = arith.mulf %46, %48 : vector<8x128xf32>
    %50 = arith.addf %38, %49 : vector<8x128xf32>
    %c4 = arith.constant 4 : index
    %51 = memref.load %arg1[%c4] : memref<16xf32, #tpu.memory_space<smem>>
    %52 = vector.broadcast %51 : f32 to vector<8x128xf32>
    %53 = arith.mulf %0, %52 : vector<8x128xf32>
    %c9 = arith.constant 9 : index
    %54 = memref.load %arg1[%c9] : memref<16xf32, #tpu.memory_space<smem>>
    %55 = vector.broadcast %54 : f32 to vector<8x128xf32>
    %56 = arith.addf %53, %55 : vector<8x128xf32>
    %cst_5 = arith.constant 0.000000e+00 : f32
    %57 = vector.broadcast %cst_5 : f32 to vector<8x128xf32>
    %58 = arith.maximumf %56, %57 : vector<8x128xf32>
    %c14 = arith.constant 14 : index
    %59 = memref.load %arg1[%c14] : memref<16xf32, #tpu.memory_space<smem>>
    %60 = vector.broadcast %59 : f32 to vector<8x128xf32>
    %61 = arith.mulf %58, %60 : vector<8x128xf32>
    %62 = arith.addf %50, %61 : vector<8x128xf32>
    %c0_6 = arith.constant 0 : index
    %c0_7 = arith.constant 0 : index
    %63 = vector.load %arg3[%c0_6, %c0_7] : memref<8x128xf32, #tpu.memory_space<vmem>>, vector<8x128xf32>
    tpu.vector_store %arg3[%c0_6, %c0_7], %62 {strides = array<i32>} : memref<8x128xf32, #tpu.memory_space<vmem>>, vector<8x128xf32>,
    return
  }
  func.func @transform_0(%arg0: i32) -> i32 {
    %c0_i32 = arith.constant 0 : i32
    %c0_i32_0 = arith.constant 0 : i32
    return %c0_i32 : i32
  }
  func.func @transform_1(%arg0: i32) -> (i32, i32) {
    %c0_i32 = arith.constant 0 : i32
    %c0_i32_0 = arith.constant 0 : i32
    return %arg0, %c0_i32 : i32, i32
  }
  func.func @transform_2(%arg0: i32) -> (i32, i32) {
    %c0_i32 = arith.constant 0 : i32
    %c0_i32_0 = arith.constant 0 : i32
    return %arg0, %c0_i32 : i32, i32
  }
}

</mosaic_0001>

<llo_original>
// kernel: tpu_custom_call.1
$region0: #{tpu_custom_call.1}
  #allocation0 [shape = 'u32[]', space=smem, size = 0x4, offset = 0x4, fixed_abs, tag = 'smem constant byte address 0x4 - core index']
  #allocation1 [shape = 'u32[144,128]{1,0:T(1,128)}', space=vmem, size = 0x12000, scoped, tag = 'internal scratch']
  %s0 = inlined_call_operand.hbm [shape: f32[16], index: 0, kind: input, shape index: {}]
  %s1 = inlined_call_operand.hbm [shape: f32[8,128], index: 1, kind: input, shape index: {}]
  %s2 = inlined_call_operand.hbm [shape: f32[8,128], index: 2, kind: output, shape index: {}]
  %s3 = sld [smem:[#allocation0]]
  $region26: #{tpu_custom_call.1} parent=0
    _
  %s5 = ssub.s32 1, %s3
  %s6 = scalar_select 0, %s5, %s3
  $region1: #{tpu_custom_call.1} parent=0
    #allocation2 [shape = 'u8[512]{0}', space=smem, size = 0x200, scoped, tag = 'input window, operand 0, single buffered']
    #allocation3 [shape = 's32[1]{0}', space=sflag, size = 0x4, scoped, tag = 'scoped memory for tpu_custom_call.1']
    #allocation4 [shape = 's32[1]{0}', space=sflag, size = 0x4, scoped, tag = 'scoped memory for tpu_custom_call.1']
    #allocation5 [shape = 's32[1]{0}', space=sflag, size = 0x4, scoped, tag = 'scoped memory for tpu_custom_call.1']
    #allocation6 [shape = 'u8[4096]{0}', space=vmem, size = 0x1000, scoped, tag = 'input window, operand 1, single buffered']
    #allocation7 [shape = 'u8[4096]{0}', space=vmem, size = 0x1000, scoped, tag = 'output window, operand 0, single buffered']
    %7 = vsyncpa [#allocation5], 0
    %8 = vsyncpa [#allocation3], 0
    %9 = vsyncpa [#allocation4], 0
    // Predicated region
    $region2: #{tpu_custom_call.1} parent=1 // pred_check
      _
    $region3: #{tpu_custom_call.1} parent=1 // pred_check_branch
      %11 = sbr.rel (0) target = $region5
    $region4: #{tpu_custom_call.1} parent=1 // pred_region
      %s13 = ssub.s32 16, 16
      %14 = vsyncadd [#allocation5], %s13
      %17 = dma.hbm_to_smem %s0, 16, [#allocation2], [#allocation5]
    $region5: #{tpu_custom_call.1} parent=1 // pred_fallthru
      _
    // Predicated region
    $region6: #{tpu_custom_call.1} parent=1 // pred_check
      _
    $region7: #{tpu_custom_call.1} parent=1 // pred_check_branch
      %19 = sbr.rel (0) target = $region9
    $region8: #{tpu_custom_call.1} parent=1 // pred_region
      %s21 = ssub.s32 128, 128
      %22 = vsyncadd [#allocation3], %s21
      %s24 = sshll.u32 [#allocation6], 4
      %s25 = int_to_ptr.vmem [resolvable:$true] %s24
      %27 = dma.hbm_to_vmem [thread:$0]  %s1, 128, %s25, [#allocation3]
    $region9: #{tpu_custom_call.1} parent=1 // pred_fallthru
      _
    // Predicated region
    $region10: #{tpu_custom_call.1} parent=1 // pred_check
      _
    $region11: #{tpu_custom_call.1} parent=1 // pred_check_branch
      %29 = sbr.rel (0) target = $region13
    $region12: #{tpu_custom_call.1} parent=1 // pred_region
      %30 = dma.done [#allocation5], 16
    $region13: #{tpu_custom_call.1} parent=1 // pred_fallthru
      _
    // Predicated region
    $region14: #{tpu_custom_call.1} parent=1 // pred_check
      _
    $region15: #{tpu_custom_call.1} parent=1 // pred_check_branch
      %32 = sbr.rel (0) target = $region17
    $region16: #{tpu_custom_call.1} parent=1 // pred_region
      %33 = dma.done [#allocation3], 128
    $region17: #{tpu_custom_call.1} parent=1 // pred_fallthru
      _
    %34 = sfence
    %v35 = vld [vmem:[#allocation6] sm:$0xff]
    %s36 = sld [smem:[#allocation2 + $0xf]]
    %v37 = vstv %s36
    %s38 = sld [smem:[#allocation2]]
    %v39 = vstv %s38
    %v40 = vmul.f32 %v35, %v39
    %s41 = sld [smem:[#allocation2 + $0x5]]
    %v42 = vstv %s41
    %v43 = vadd.f32 %v40, %v42
    %v44 = vmax.f32 %v43, 0.0
    %s45 = sld [smem:[#allocation2 + $0xa]]
    %v46 = vstv %s45
    %v47 = vmul.f32 %v44, %v46
    %v48 = vadd.f32 %v37, %v47
    %s49 = sld [smem:[#allocation2 + $0x1]]
    %v50 = vstv %s49
    %v51 = vmul.f32 %v35, %v50
    %s52 = sld [smem:[#allocation2 + $0x6]]
    %v53 = vstv %s52
    %v54 = vadd.f32 %v51, %v53
    %v55 = vmax.f32 %v54, 0.0
    %s56 = sld [smem:[#allocation2 + $0xb]]
    %v57 = vstv %s56
    %v58 = vmul.f32 %v55, %v57
    %v59 = vadd.f32 %v48, %v58
    %s60 = sld [smem:[#allocation2 + $0x2]]
    %v61 = vstv %s60
    %v62 = vmul.f32 %v35, %v61
    %s63 = sld [smem:[#allocation2 + $0x7]]
    %v64 = vstv %s63
    %v65 = vadd.f32 %v62, %v64
    %v66 = vmax.f32 %v65, 0.0
    %s67 = sld [smem:[#allocation2 + $0xc]]
    %v68 = vstv %s67
    %v69 = vmul.f32 %v66, %v68
    %v70 = vadd.f32 %v59, %v69
    %s71 = sld [smem:[#allocation2 + $0x3]]
    %v72 = vstv %s71
    %v73 = vmul.f32 %v35, %v72
    %s74 = sld [smem:[#allocation2 + $0x8]]
    %v75 = vstv %s74
    %v76 = vadd.f32 %v73, %v75
    %v77 = vmax.f32 %v76, 0.0
    %s78 = sld [smem:[#allocation2 + $0xd]]
    %v79 = vstv %s78
    %v80 = vmul.f32 %v77, %v79
    %v81 = vadd.f32 %v70, %v80
    %s82 = sld [smem:[#allocation2 + $0x4]]
    %v83 = vstv %s82
    %v84 = vmul.f32 %v35, %v83
    %s85 = sld [smem:[#allocation2 + $0x9]]
    %v86 = vstv %s85
    %v87 = vadd.f32 %v84, %v86
    %v88 = vmax.f32 %v87, 0.0
    %s89 = sld [smem:[#allocation2 + $0xe]]
    %v90 = vstv %s89
    %v91 = vmul.f32 %v88, %v90
    %v92 = vadd.f32 %v81, %v91
    %93 = vst [vmem:[#allocation7] sm:$0xff] %v92
    // Predicated region
    $region18: #{tpu_custom_call.1} parent=1 // pred_check
      _
    $region19: #{tpu_custom_call.1} parent=1 // pred_check_branch
      %95 = sbr.rel (0) target = $region21
    $region20: #{tpu_custom_call.1} parent=1 // pred_region
      %s97 = ssub.s32 128, 128
      %98 = vsyncadd [#allocation4], %s97
      %s100 = sshll.u32 [#allocation7], 4
      %s101 = int_to_ptr.vmem [resolvable:$true] %s100
      %103 = dma.vmem_to_hbm [thread:$0]  %s101, 128, %s2, [#allocation4]
    $region21: #{tpu_custom_call.1} parent=1 // pred_fallthru
      _
    // Predicated region
    $region22: #{tpu_custom_call.1} parent=1 // pred_check
      _
    $region23: #{tpu_custom_call.1} parent=1 // pred_check_branch
      %105 = sbr.rel (0) target = $region25
    $region24: #{tpu_custom_call.1} parent=1 // pred_region
      %106 = dma.done [#allocation4], 128
    $region25: #{tpu_custom_call.1} parent=1 // pred_fallthru
      _
    %107 = vsyncpa [#allocation3], 1
    %108 = vsyncpa [#allocation4], 1
    %109 = vsyncpa [#allocation5], 1

</llo_original>
